<compile_context>
chip_gen: v5e
topology: v5e:2x2
jax: 0.10.0
libtpu: 0.0.40
codegen_flags: <defaults>
</compile_context>

<pallas_src>
import jax
import jax.numpy as jnp
from jax.experimental import pallas as pl
from jax.experimental.pallas import tpu as pltpu


def _robustness_kernel(x_ref, c_ref, o_ref, acc_ref):
    # x_ref:   (TB, TL) VMEM block of flattened (time*channel) columns
    # c_ref:   (1, TL)  tiled thresholds for this lane tile
    # o_ref:   (TB, 1)  per-row robustness (resident across the reduction axis)
    # acc_ref: (TB, 1)  f32 running-min scratch
    j = pl.program_id(1)

    @pl.when(j == 0)
    def _():
        acc_ref[...] = jnp.full(acc_ref.shape, jnp.inf, dtype=acc_ref.dtype)

    diff = x_ref[...].astype(jnp.float32) - c_ref[...].astype(jnp.float32)  # VPU
    row_min = jnp.min(diff, axis=1, keepdims=True)                          # XLU lane reduce
    acc_ref[...] = jnp.minimum(acc_ref[...], row_min)

    @pl.when(j == pl.num_programs(1) - 1)
    def _():
        o_ref[...] = acc_ref[...].astype(o_ref.dtype)


def robustness_forward(x, c, *, max_rows_per_block=512, vmem_block_bytes=4 << 20):
    """rho[b] = min over (t, k) of (x[b, t, k] - c[k]). Returns shape (B,)."""
    B, T, K = x.shape
    L = T * K
    itemsize = x.dtype.itemsize

    # --- rows per block (sublane dim): as many as fit the budget, multiple of 8
    bytes_per_row = L * itemsize
    tb = max(8, min(max_rows_per_block, vmem_block_bytes // max(bytes_per_row, 1)))
    tb = (tb // 8) * 8
    if B <= tb:
        tb = B
        b_pad = B
    else:
        b_pad = ((B + tb - 1) // tb) * tb

    # --- lanes per block (reduction tile): full L if it fits / is not 128-aligned,
    #     otherwise the largest multiple of 128 that divides L and fits the budget.
    max_block_elems = max(vmem_block_bytes // itemsize, 128)
    if tb * L <= max_block_elems or L % 128 != 0:
        tl = L
    else:
        tl = max((max_block_elems // tb) // 128 * 128, 128)
        tl = min(tl, L)
        while L % tl != 0:
            tl -= 128

    # Lane-dense views: last dim L = T*K (256 in the benchmark, multiple of 128).
    x2 = x.reshape(B, L)
    if b_pad != B:
        x2 = jnp.pad(x2, ((0, b_pad - B), (0, 0)))       # padded rows are discarded
    c2 = jnp.tile(c.astype(x.dtype), T).reshape(1, L)    # c2[0, t*K + k] = c[k]

    num_row_blocks = b_pad // tb
    num_lane_blocks = L // tl

    out = pl.pallas_call(
        _robustness_kernel,
        out_shape=jax.ShapeDtypeStruct((b_pad, 1), x.dtype),
        grid_spec=pltpu.PrefetchScalarGridSpec(
            num_scalar_prefetch=0,
            grid=(num_row_blocks, num_lane_blocks),       # reduction axis last
            in_specs=[
                pl.BlockSpec((tb, tl), lambda i, j: (i, j)),
                pl.BlockSpec((1, tl), lambda i, j: (0, j)),
            ],
            out_specs=pl.BlockSpec((tb, 1), lambda i, j: (i, 0)),
            scratch_shapes=[pltpu.VMEM((tb, 1), jnp.float32)],
        ),
        compiler_params=pltpu.CompilerParams(
            # Batch-block axis is independent (megacore-shardable on v7x);
            # lane-tile axis carries the running-min accumulator.
            dimension_semantics=("parallel", "arbitrary"),
            vmem_limit_bytes=32 * 1024 * 1024,
        ),
    )(x2, c2)

    return out[:B, 0]


if __name__ == "__main__":
    # Small shapes consistent with the benchmark: batch=2, seq(time)=8, wide K=32.
    B, T, K = 2, 8, 32

    key = jax.random.PRNGKey(0)
    kx, _ = jax.random.split(key)
    x = jax.random.normal(kx, (B, T, K), dtype=jnp.float32)

    # Deterministic threshold parameters c_k (the predicate constants of the formula).
    c = (0.05 * jnp.arange(K, dtype=jnp.float32)) - 0.5

    rho = robustness_forward(x, c)
    rho = jax.block_until_ready(rho)

    # Reference in plain JAX.
    rho_ref = jnp.min(x - c[None, None, :], axis=(1, 2))
    assert rho.shape == (B,)
    assert jnp.allclose(rho, rho_ref, atol=1e-6), (rho, rho_ref)

    print("KERNEL_OK")
</pallas_src>

<mosaic_0001>
module attributes {stable_mosaic.version = 11 : i64} {
  func.func @_robustness_kernel(%arg0: i32, %arg1: i32, %arg2: memref<2x256xf32, #tpu.memory_space<vmem>>, %arg3: memref<1x256xf32, #tpu.memory_space<vmem>>, %arg4: memref<2x1xf32, #tpu.memory_space<vmem>>, %arg5: memref<2x1xf32, #tpu.memory_space<vmem>>) attributes {dimension_semantics = [#tpu.dimension_semantics<parallel>, #tpu.dimension_semantics<arbitrary>], iteration_bounds = array<i64: 1, 1>, scalar_prefetch = 0 : i64, scratch_operands = 1 : i64, tpu.core_type = #tpu.core_type<tc>, window_params = [{transform_indices = @transform_0, window_bounds = array<i64: 2, 256>}, {transform_indices = @transform_1, window_bounds = array<i64: 1, 256>}, {transform_indices = @transform_2, window_bounds = array<i64: 2, 1>}]} {
    %c0_i32 = arith.constant 0 : i32
    %0 = arith.cmpi eq, %arg1, %c0_i32 : i32
    %1 = arith.extui %0 : i1 to i32
    %c0_i32_0 = arith.constant 0 : i32
    %2 = arith.cmpi ne, %1, %c0_i32_0 : i32
    scf.if %2 {
      %cst_10 = arith.constant 0x7F800000 : f32
      %15 = vector.broadcast %cst_10 : f32 to vector<2x1xf32>
      %c0_11 = arith.constant 0 : index
      %c0_12 = arith.constant 0 : index
      %16 = vector.load %arg5[%c0_11, %c0_12] : memref<2x1xf32, #tpu.memory_space<vmem>>, vector<2x1xf32>
      tpu.vector_store %arg5[%c0_11, %c0_12], %15 {strides = array<i32>} : memref<2x1xf32, #tpu.memory_space<vmem>>, vector<2x1xf32>,
    } else {
    }
    %c0 = arith.constant 0 : index
    %c0_1 = arith.constant 0 : index
    %3 = vector.load %arg2[%c0, %c0_1] : memref<2x256xf32, #tpu.memory_space<vmem>>, vector<2x256xf32>
    %c0_2 = arith.constant 0 : index
    %c0_3 = arith.constant 0 : index
    %4 = vector.load %arg3[%c0_2, %c0_3] : memref<1x256xf32, #tpu.memory_space<vmem>>, vector<1x256xf32>
    %5 = vector.broadcast %4 : vector<1x256xf32> to vector<2x256xf32>
    %6 = arith.subf %3, %5 : vector<2x256xf32>
    %cst = arith.constant dense<0x7F800000> : vector<2xf32>
    %7 = vector.multi_reduction <minimumf>, %6, %cst [1] : vector<2x256xf32> to vector<2xf32>
    %8 = vector.shape_cast %7 : vector<2xf32> to vector<2x1xf32>
    %c0_4 = arith.constant 0 : index
    %c0_5 = arith.constant 0 : index
    %9 = vector.load %arg5[%c0_4, %c0_5] : memref<2x1xf32, #tpu.memory_space<vmem>>, vector<2x1xf32>
    %10 = arith.minimumf %9, %8 : vector<2x1xf32>
    %c0_6 = arith.constant 0 : index
    %c0_7 = arith.constant 0 : index
    %11 = vector.load %arg5[%c0_6, %c0_7] : memref<2x1xf32, #tpu.memory_space<vmem>>, vector<2x1xf32>
    tpu.vector_store %arg5[%c0_6, %c0_7], %10 {strides = array<i32>} : memref<2x1xf32, #tpu.memory_space<vmem>>, vector<2x1xf32>,
    %c0_i32_8 = arith.constant 0 : i32
    %12 = arith.cmpi eq, %arg1, %c0_i32_8 : i32
    %13 = arith.extui %12 : i1 to i32
    %c0_i32_9 = arith.constant 0 : i32
    %14 = arith.cmpi ne, %13, %c0_i32_9 : i32
    scf.if %14 {
      %c0_10 = arith.constant 0 : index
      %c0_11 = arith.constant 0 : index
      %15 = vector.load %arg5[%c0_10, %c0_11] : memref<2x1xf32, #tpu.memory_space<vmem>>, vector<2x1xf32>
      %c0_12 = arith.constant 0 : index
      %c0_13 = arith.constant 0 : index
      %16 = vector.load %arg4[%c0_12, %c0_13] : memref<2x1xf32, #tpu.memory_space<vmem>>, vector<2x1xf32>
      tpu.vector_store %arg4[%c0_12, %c0_13], %15 {strides = array<i32>} : memref<2x1xf32, #tpu.memory_space<vmem>>, vector<2x1xf32>,
    } else {
    }
    return
  }
  func.func @transform_0(%arg0: i32, %arg1: i32) -> (i32, i32) {
    %c0_i32 = arith.constant 0 : i32
    return %arg0, %arg1 : i32, i32
  }
  func.func @transform_1(%arg0: i32, %arg1: i32) -> (i32, i32) {
    %c0_i32 = arith.constant 0 : i32
    %c0_i32_0 = arith.constant 0 : i32
    return %c0_i32, %arg1 : i32, i32
  }
  func.func @transform_2(%arg0: i32, %arg1: i32) -> (i32, i32) {
    %c0_i32 = arith.constant 0 : i32
    %c0_i32_0 = arith.constant 0 : i32
    return %arg0, %c0_i32 : i32, i32
  }
}

</mosaic_0001>

<llo_original>
// kernel: tpu_custom_call.1
$region0: #{tpu_custom_call.1}
  #allocation0 [shape = 'u32[]', space=smem, size = 0x4, offset = 0x4, fixed_abs, tag = 'smem constant byte address 0x4 - core index']
  #allocation1 [shape = 'u32[72,128]{1,0:T(1,128)}', space=vmem, size = 0x9000, scoped, tag = 'internal scratch']
  #allocation2 [shape = 'f32[2,1]{1,0:T(2,128)}', space=vmem, size = 0x400, scoped, tag = 'scratch operand']
  %s0 = inlined_call_operand.hbm [shape: f32[2,256], index: 0, kind: input, shape index: {}]
  %s1 = inlined_call_operand.hbm [shape: f32[1,256], index: 1, kind: input, shape index: {}]
  %s2 = inlined_call_operand.vmem [shape: f32[2,1], index: 2, kind: output, shape index: {}]
  %s3 = sld [smem:[#allocation0]]
  $region34: #{tpu_custom_call.1} parent=0
    _
  %s5 = ssub.s32 1, %s3
  %s6 = scalar_select 0, %s5, %s3
  $region1: #{tpu_custom_call.1} parent=0
    #allocation3 [shape = 'u8[2048]{0}', space=vmem, size = 0x800, scoped, tag = 'input window, operand 0, single buffered']
    #allocation4 [shape = 's32[1]{0}', space=sflag, size = 0x4, scoped, tag = 'scoped memory for tpu_custom_call.1']
    #allocation5 [shape = 'u8[1024]{0}', space=vmem, size = 0x400, scoped, tag = 'input window, operand 1, single buffered']
    #allocation6 [shape = 's32[1]{0}', space=sflag, size = 0x4, scoped, tag = 'scoped memory for tpu_custom_call.1']
    %7 = vsyncpa [#allocation4], 0
    %8 = vsyncpa [#allocation6], 0
    // Predicated region
    $region2: #{tpu_custom_call.1} parent=1 // pred_check
      _
    $region3: #{tpu_custom_call.1} parent=1 // pred_check_branch
      %10 = sbr.rel (0) target = $region5
    $region4: #{tpu_custom_call.1} parent=1 // pred_region
      %12 = vsyncadd [#allocation4], 0
      %s14 = sshll.u32 %s0, 4
      %s15 = int_to_ptr.hbm [resolvable:$true] %s14
      %s16 = sshll.u32 [#allocation3], 4
      %s17 = int_to_ptr.vmem [resolvable:$true] %s16
      %19 = dma.hbm_to_vmem [thread:$0]  %s15, 64, %s17, [#allocation4]
    $region5: #{tpu_custom_call.1} parent=1 // pred_fallthru
      _
    // Predicated region
    $region6: #{tpu_custom_call.1} parent=1 // pred_check
      _
    $region7: #{tpu_custom_call.1} parent=1 // pred_check_branch
      %21 = sbr.rel (0) target = $region9
    $region8: #{tpu_custom_call.1} parent=1 // pred_region
      %23 = vsyncadd [#allocation6], 0
      %s25 = sshll.u32 %s1, 4
      %s26 = int_to_ptr.hbm [resolvable:$true] %s25
      %s27 = sshll.u32 [#allocation5], 4
      %s28 = int_to_ptr.vmem [resolvable:$true] %s27
      %30 = dma.hbm_to_vmem [thread:$0]  %s26, 32, %s28, [#allocation6]
    $region9: #{tpu_custom_call.1} parent=1 // pred_fallthru
      _
    // Predicated region
    $region10: #{tpu_custom_call.1} parent=1 // pred_check
      _
    $region11: #{tpu_custom_call.1} parent=1 // pred_check_branch
      %32 = sbr.rel (0) target = $region13
    $region12: #{tpu_custom_call.1} parent=1 // pred_region
      %34 = dma.done [#allocation4], 64
    $region13: #{tpu_custom_call.1} parent=1 // pred_fallthru
      _
    // Predicated region
    $region14: #{tpu_custom_call.1} parent=1 // pred_check
      _
    $region15: #{tpu_custom_call.1} parent=1 // pred_check_branch
      %36 = sbr.rel (0) target = $region17
    $region16: #{tpu_custom_call.1} parent=1 // pred_region
      %38 = dma.done [#allocation6], 32
    $region17: #{tpu_custom_call.1} parent=1 // pred_fallthru
      _
    %p39 = scmp.eq.s32.totalorder 0, 0
    // Predicated region
    $region18: #{tpu_custom_call.1} parent=1 // pred_check
      %p40 = pneg %p39
    $region19: #{tpu_custom_call.1} parent=1 // pred_check_branch
      %42 = sbr.rel (%p40) target = $region21
    $region20: #{tpu_custom_call.1} parent=1 // pred_region
      %vm43 = vcmask 1024
      %44 = vst.msk [vmem:[#allocation2] sm:$0x3] %vm43, inf
    $region21: #{tpu_custom_call.1} parent=1 // pred_fallthru
      _
    %v45 = vld [vmem:[#allocation3] sm:$0xf]
    %v46 = vld [vmem:[#allocation5] sm:$0x3]
    %v48 = vperm.slane %v46, 0
    %v49 = vperm.slane %v46, 1
    %v50 = vrot.slane %v49, 6
    %vm51 = vcmask 1041408
    %v52 = vsel %vm51, %v48, %v50
    %v54 = vsub.f32 %v45, %v52
    %56 = vst [vmem:[#allocation1] ss:$4 sm:$0xff] %v54
    %v57 = vld.sshfl [vmem:[#allocation1] sm:$0xff pattern:$0x73625140]
    %v58 = vld.sshfl [vmem:[#allocation1 + $0x8] sm:$0xff pattern:$0x73625140]
    %v61 = vsel %vm51, %v57, inf
    %v62 = vsel %vm51, %v58, inf
    %v63 = vmin.f32 %v61, %v62
    %64 = vmin.xlane.f32.xlu0 %v63
    %v65 = vpop.xlane.xlu0 %64
    %v66 = vld [vmem:[#allocation2] sm:$0x3]
    %v67 = vmin.f32 %v66, %v65
    %vm68 = vcmask 1024
    %69 = vst.msk [vmem:[#allocation2] sm:$0x3] %vm68, %v67
    // Predicated region
    $region22: #{tpu_custom_call.1} parent=1 // pred_check
      %p70 = pneg %p39
    $region23: #{tpu_custom_call.1} parent=1 // pred_check_branch
      %72 = sbr.rel (%p70) target = $region25
    $region24: #{tpu_custom_call.1} parent=1 // pred_region
      %v73 = vld [vmem:[#allocation2] sm:$0x3]
      %74 = vst.msk [vmem:[%s2] sm:$0x3] %vm68, %v73
    $region25: #{tpu_custom_call.1} parent=1 // pred_fallthru
      _
    // Predicated region
    $region26: #{tpu_custom_call.1} parent=1 // pred_check
      _
    $region27: #{tpu_custom_call.1} parent=1 // pred_check_branch
      %76 = sbr.rel (0) target = $region29
    $region28: #{tpu_custom_call.1} parent=1 // pred_region
      _
    $region29: #{tpu_custom_call.1} parent=1 // pred_fallthru
      _
    // Predicated region
    $region30: #{tpu_custom_call.1} parent=1 // pred_check
      _
    $region31: #{tpu_custom_call.1} parent=1 // pred_check_branch
      %78 = sbr.rel (0) target = $region33
    $region32: #{tpu_custom_call.1} parent=1 // pred_region
      _
    $region33: #{tpu_custom_call.1} parent=1 // pred_fallthru
      _
    %79 = vsyncpa [#allocation4], 1
    %80 = vsyncpa [#allocation6], 1

</llo_original>
